<compile_context>
chip_gen: v7x
topology: tpu7x:2x2x1
jax: 0.10.0
libtpu: 0.0.40
codegen_flags: <defaults>
</compile_context>

<pallas_src>
import jax
import jax.numpy as jnp
from jax.experimental import pallas as pl
from jax.experimental.pallas import tpu as pltpu


def _make_tiling_kernel(t, h, w, dc, needs_cast, compute_dtype):
    oh, ow = h * t, w * t

    def kernel(b_ref, x_ref, o_ref):
        # b_ref: (t, w, ow) 0/1 column-scatter matrices (compute dtype)
        # x_ref: (1, dc, t*t*h, w) native dtype
        # o_ref: (1, dc, oh, ow) f32
        parts = []
        for i in range(t):               # t is tiny (2-4): cheap static unroll
            acc = None
            for j in range(t):
                # Contiguous input rows for plane (i, j): (dc, h, w)
                blk = x_ref[0, :, (i * t + j) * h:(i * t + j + 1) * h, :]
                blk = blk.reshape(dc * h, w)          # lane dim (w) unchanged
                if needs_cast:
                    blk = blk.astype(compute_dtype)
                # Column interleave via 0/1 matmul, batched over all dc channels:
                # r[c*h+hs, ws*t+j] = blk[c*h+hs, ws]
                r = jnp.dot(blk, b_ref[j], preferred_element_type=jnp.float32)
                acc = r if acc is None else acc + r    # disjoint columns per j
            parts.append(acc.reshape(dc, h, ow))
        # Row interleave: (dc, h, t, ow) -> (dc, h*t, ow); lane dim (ow) unchanged,
        # only sublane regrouping. Single full-chunk store.
        y = jnp.stack(parts, axis=2).reshape(dc, oh, ow)
        o_ref[0] = y

    return kernel


def _pad_up(n, m):
    return ((n + m - 1) // m) * m


def tiling_pallas(x, tile_dim):
    """Pallas equivalent of tiling(x_dim, tile_dim).forward(x)."""
    b, d, h, w = x.shape
    t = int(tile_dim)
    assert d % (t * t) == 0, "channel dim must be divisible by tile_dim**2"
    out_d = d // (t * t)
    oh, ow = h * t, w * t
    tt_h = t * t * h

    # Compute dtype for the 0/1 selection matmul (exact in any dtype).
    if x.dtype == jnp.bfloat16 or x.dtype == jnp.float32:
        compute_dtype = x.dtype
        needs_cast = False
    else:
        compute_dtype = jnp.float32
        needs_cast = True

    # B[j, ws, m] = 1 iff m == ws*t + j   (column scatter), a few KiB.
    ws_ = jnp.arange(w)[:, None]
    mm = jnp.arange(ow)[None, :]
    B = jnp.stack([(mm == ws_ * t + j) for j in range(t)]).astype(compute_dtype)

    # ---- Generation-aware VMEM budget (padded (8,128) tiles, double buffering,
    # intermediates, B) ----
    try:
        vmem_cap = int(pltpu.get_tpu_info().vmem_capacity_bytes)
    except Exception:
        vmem_cap = 64 * 1024 * 1024          # conservative: v7x per-TC VMEM
    in_bytes_per_ch = _pad_up(tt_h, 8) * _pad_up(w, 128) * x.dtype.itemsize
    out_bytes_per_ch = _pad_up(oh, 8) * _pad_up(ow, 128) * 4
    b_bytes = t * _pad_up(w, 8) * _pad_up(ow, 128) * jnp.dtype(compute_dtype).itemsize
    # 2x in (double-buffer) + 2x out (double-buffer) + ~2x out of f32 intermediates
    per_ch = 2 * in_bytes_per_ch + 4 * out_bytes_per_ch
    budget = int(vmem_cap * 0.40) - b_bytes
    max_dc = max(1, budget // per_ch)
    dc = max(1, min(out_d, max_dc))

    # Keep >=4 grid steps when possible: v7x shards "parallel" axes across its
    # 2 TensorCores and the pipeline needs >1 step per core to overlap DMA.
    target_steps = 4
    if out_d > 1 and b < target_steps:
        needed_chunks = -(-target_steps // b)
        dc = min(dc, max(1, -(-out_d // needed_chunks)))
    n_chunks = pl.cdiv(out_d, dc)   # ragged last chunk -> masked OOB block
    # TODO(synk): for very large h*w where a single channel exceeds the budget,
    # add an h-tiling grid axis; for very large w, replace the B matmul with a
    # lane interleave to avoid the O(t^2*w^2)-byte matrix.

    # Free row-major view (no data movement): (b, d, h, w) -> (b, out_d, t*t*h, w)
    x_r = x.reshape(b, out_d, tt_h, w)

    kernel = _make_tiling_kernel(t, h, w, dc, needs_cast, compute_dtype)
    vmem_limit = int(min(vmem_cap * 0.8, 110 * 1024 * 1024))
    return pl.pallas_call(
        kernel,
        out_shape=jax.ShapeDtypeStruct((b, out_d, oh, ow), jnp.float32),
        grid_spec=pltpu.PrefetchScalarGridSpec(
            num_scalar_prefetch=0,
            grid=(b, n_chunks),
            in_specs=[
                pl.BlockSpec((t, w, ow), lambda bi, ci: (0, 0, 0)),
                pl.BlockSpec((1, dc, tt_h, w), lambda bi, ci: (bi, ci, 0, 0)),
            ],
            out_specs=pl.BlockSpec((1, dc, oh, ow), lambda bi, ci: (bi, ci, 0, 0)),
        ),
        compiler_params=pltpu.CompilerParams(
            dimension_semantics=("parallel", "parallel"),
            vmem_limit_bytes=vmem_limit,
        ),
    )(B, x_r)


def tiling_reference(x, tile_dim):
    """Pure-JAX reference matching the PyTorch loops."""
    b, d, h, w = x.shape
    t = tile_dim
    od = d // (t * t)
    y = x.reshape(b, od, t, t, h, w)
    y = jnp.transpose(y, (0, 1, 4, 2, 5, 3))  # (b, od, h, t, w, t)
    return y.reshape(b, od, h * t, w * t).astype(jnp.float32)


if __name__ == "__main__":
    key = jax.random.PRNGKey(0)
    k1, k2, k3 = jax.random.split(key, 3)

    # Main case: x_dim = (2, 16, 8, 8), tile_dim = 2  ->  out (2, 4, 16, 16)
    x = jax.random.normal(k1, (2, 16, 8, 8), dtype=jnp.float32)
    out = jax.block_until_ready(tiling_pallas(x, 2))
    assert out.shape == (2, 4, 16, 16) and out.dtype == jnp.float32
    assert jnp.array_equal(out, tiling_reference(x, 2)), "mismatch (f32, t=2)"

    # Ragged chunking case: out_d=5 split into chunks of 2 -> masked last block.
    x2 = jax.random.normal(k2, (1, 20, 8, 8), dtype=jnp.float32)
    out2 = jax.block_until_ready(tiling_pallas(x2, 2))
    assert jnp.array_equal(out2, tiling_reference(x2, 2)), "mismatch (ragged chunks)"

    # bf16 input, tile_dim=3: low-precision MXU path, t != 2.
    x3 = jax.random.normal(k3, (2, 18, 8, 8), dtype=jnp.float32).astype(jnp.bfloat16)
    out3 = jax.block_until_ready(tiling_pallas(x3, 3))
    assert out3.dtype == jnp.float32
    assert jnp.array_equal(out3, tiling_reference(x3, 3)), "mismatch (bf16, t=3)"

    print("KERNEL_OK")
</pallas_src>

<mosaic_0001>
module attributes {stable_mosaic.version = 11 : i64} {
  func.func @kernel(%arg0: i32, %arg1: i32, %arg2: memref<2x8x16xf32, #tpu.memory_space<vmem>>, %arg3: memref<1x2x32x8xf32, #tpu.memory_space<vmem>>, %arg4: memref<1x2x16x16xf32, #tpu.memory_space<vmem>>) attributes {dimension_semantics = [#tpu.dimension_semantics<parallel>, #tpu.dimension_semantics<parallel>], iteration_bounds = array<i64: 2, 2>, scalar_prefetch = 0 : i64, scratch_operands = 0 : i64, tpu.core_type = #tpu.core_type<tc>, window_params = [{pipeline_mode = #tpu.pipeline_mode<synchronous>, transform_indices = @transform_0, window_bounds = array<i64: 2, 8, 16>}, {transform_indices = @transform_1, window_bounds = array<i64: 1, 2, 32, 8>}, {transform_indices = @transform_2, window_bounds = array<i64: 1, 2, 16, 16>}]} {
    %c0 = arith.constant 0 : index
    %c0_0 = arith.constant 0 : index
    %c0_1 = arith.constant 0 : index
    %c0_2 = arith.constant 0 : index
    %0 = vector.load %arg3[%c0, %c0_0, %c0_1, %c0_2] : memref<1x2x32x8xf32, #tpu.memory_space<vmem>>, vector<1x2x8x8xf32>
    %1 = vector.shape_cast %0 : vector<1x2x8x8xf32> to vector<2x8x8xf32>
    %2 = vector.shape_cast %1 : vector<2x8x8xf32> to vector<16x8xf32>
    %c0_3 = arith.constant 0 : index
    %c0_4 = arith.constant 0 : index
    %c0_5 = arith.constant 0 : index
    %3 = vector.load %arg2[%c0_3, %c0_4, %c0_5] : memref<2x8x16xf32, #tpu.memory_space<vmem>>, vector<1x8x16xf32>
    %4 = vector.shape_cast %3 : vector<1x8x16xf32> to vector<8x16xf32>
    %cst = arith.constant dense<0.000000e+00> : vector<16x16xf32>
    %5 = tpu.matmul %2, %4, %cst {dimension_numbers = #tpu.dot_dimension_numbers<[1], [0], [0], [1], [0, 0, 1, 1], [], []>} : vector<16x8xf32>, vector<8x16xf32>, vector<16x16xf32> -> vector<16x16xf32>
    %c0_6 = arith.constant 0 : index
    %c0_7 = arith.constant 0 : index
    %c8 = arith.constant 8 : index
    %c0_8 = arith.constant 0 : index
    %6 = vector.load %arg3[%c0_6, %c0_7, %c8, %c0_8] : memref<1x2x32x8xf32, #tpu.memory_space<vmem>>, vector<1x2x8x8xf32>
    %7 = vector.shape_cast %6 : vector<1x2x8x8xf32> to vector<2x8x8xf32>
    %8 = vector.shape_cast %7 : vector<2x8x8xf32> to vector<16x8xf32>
    %c1 = arith.constant 1 : index
    %c0_9 = arith.constant 0 : index
    %c0_10 = arith.constant 0 : index
    %9 = vector.load %arg2[%c1, %c0_9, %c0_10] : memref<2x8x16xf32, #tpu.memory_space<vmem>>, vector<1x8x16xf32>
    %10 = vector.shape_cast %9 : vector<1x8x16xf32> to vector<8x16xf32>
    %cst_11 = arith.constant dense<0.000000e+00> : vector<16x16xf32>
    %11 = tpu.matmul %8, %10, %cst_11 {dimension_numbers = #tpu.dot_dimension_numbers<[1], [0], [0], [1], [0, 0, 1, 1], [], []>} : vector<16x8xf32>, vector<8x16xf32>, vector<16x16xf32> -> vector<16x16xf32>
    %12 = arith.addf %5, %11 : vector<16x16xf32>
    %13 = vector.shape_cast %12 : vector<16x16xf32> to vector<2x8x16xf32>
    %c0_12 = arith.constant 0 : index
    %c0_13 = arith.constant 0 : index
    %c16 = arith.constant 16 : index
    %c0_14 = arith.constant 0 : index
    %14 = vector.load %arg3[%c0_12, %c0_13, %c16, %c0_14] : memref<1x2x32x8xf32, #tpu.memory_space<vmem>>, vector<1x2x8x8xf32>
    %15 = vector.shape_cast %14 : vector<1x2x8x8xf32> to vector<2x8x8xf32>
    %16 = vector.shape_cast %15 : vector<2x8x8xf32> to vector<16x8xf32>
    %c0_15 = arith.constant 0 : index
    %c0_16 = arith.constant 0 : index
    %c0_17 = arith.constant 0 : index
    %17 = vector.load %arg2[%c0_15, %c0_16, %c0_17] : memref<2x8x16xf32, #tpu.memory_space<vmem>>, vector<1x8x16xf32>
    %18 = vector.shape_cast %17 : vector<1x8x16xf32> to vector<8x16xf32>
    %cst_18 = arith.constant dense<0.000000e+00> : vector<16x16xf32>
    %19 = tpu.matmul %16, %18, %cst_18 {dimension_numbers = #tpu.dot_dimension_numbers<[1], [0], [0], [1], [0, 0, 1, 1], [], []>} : vector<16x8xf32>, vector<8x16xf32>, vector<16x16xf32> -> vector<16x16xf32>
    %c0_19 = arith.constant 0 : index
    %c0_20 = arith.constant 0 : index
    %c24 = arith.constant 24 : index
    %c0_21 = arith.constant 0 : index
    %20 = vector.load %arg3[%c0_19, %c0_20, %c24, %c0_21] : memref<1x2x32x8xf32, #tpu.memory_space<vmem>>, vector<1x2x8x8xf32>
    %21 = vector.shape_cast %20 : vector<1x2x8x8xf32> to vector<2x8x8xf32>
    %22 = vector.shape_cast %21 : vector<2x8x8xf32> to vector<16x8xf32>
    %c1_22 = arith.constant 1 : index
    %c0_23 = arith.constant 0 : index
    %c0_24 = arith.constant 0 : index
    %23 = vector.load %arg2[%c1_22, %c0_23, %c0_24] : memref<2x8x16xf32, #tpu.memory_space<vmem>>, vector<1x8x16xf32>
    %24 = vector.shape_cast %23 : vector<1x8x16xf32> to vector<8x16xf32>
    %cst_25 = arith.constant dense<0.000000e+00> : vector<16x16xf32>
    %25 = tpu.matmul %22, %24, %cst_25 {dimension_numbers = #tpu.dot_dimension_numbers<[1], [0], [0], [1], [0, 0, 1, 1], [], []>} : vector<16x8xf32>, vector<8x16xf32>, vector<16x16xf32> -> vector<16x16xf32>
    %26 = arith.addf %19, %25 : vector<16x16xf32>
    %27 = vector.shape_cast %26 : vector<16x16xf32> to vector<2x8x16xf32>
    %28 = vector.shape_cast %13 : vector<2x8x16xf32> to vector<2x8x1x16xf32>
    %29 = vector.shape_cast %27 : vector<2x8x16xf32> to vector<2x8x1x16xf32>
    %30 = tpu.concatenate %28, %29 in 2 : vector<2x8x1x16xf32>, vector<2x8x1x16xf32> -> vector<2x8x2x16xf32>
    %31 = vector.shape_cast %30 : vector<2x8x2x16xf32> to vector<2x16x16xf32>
    %c0_26 = arith.constant 0 : index
    %c0_27 = arith.constant 0 : index
    %c0_28 = arith.constant 0 : index
    %c0_29 = arith.constant 0 : index
    %32 = vector.load %arg4[%c0_26, %c0_27, %c0_28, %c0_29] : memref<1x2x16x16xf32, #tpu.memory_space<vmem>>, vector<1x2x16x16xf32>
    %33 = vector.shape_cast %32 : vector<1x2x16x16xf32> to vector<2x16x16xf32>
    %34 = vector.shape_cast %31 : vector<2x16x16xf32> to vector<1x2x16x16xf32>
    tpu.vector_store %arg4[%c0_26, %c0_27, %c0_28, %c0_29], %34 {strides = array<i32>} : memref<1x2x16x16xf32, #tpu.memory_space<vmem>>, vector<1x2x16x16xf32>,
    return
  }
  func.func @transform_0(%arg0: i32, %arg1: i32) -> (i32, i32, i32) {
    %c0_i32 = arith.constant 0 : i32
    %c0_i32_0 = arith.constant 0 : i32
    %c0_i32_1 = arith.constant 0 : i32
    %c0_i32_2 = arith.constant 0 : i32
    return %c0_i32, %c0_i32_0, %c0_i32_1 : i32, i32, i32
  }
  func.func @transform_1(%arg0: i32, %arg1: i32) -> (i32, i32, i32, i32) {
    %c0_i32 = arith.constant 0 : i32
    %c0_i32_0 = arith.constant 0 : i32
    %c0_i32_1 = arith.constant 0 : i32
    return %arg0, %arg1, %c0_i32, %c0_i32_0 : i32, i32, i32, i32
  }
  func.func @transform_2(%arg0: i32, %arg1: i32) -> (i32, i32, i32, i32) {
    %c0_i32 = arith.constant 0 : i32
    %c0_i32_0 = arith.constant 0 : i32
    %c0_i32_1 = arith.constant 0 : i32
    return %arg0, %arg1, %c0_i32, %c0_i32_0 : i32, i32, i32, i32
  }
}

</mosaic_0001>

<llo_original>
// kernel: tpu_custom_call.1
$region0: #{tpu_custom_call.1}
  #allocation0 [shape = 'u32[]', space=smem, size = 0x4, offset = 0x4, fixed_abs, tag = 'smem constant byte address 0x4 - core index']
  #allocation1 [shape = 'u32[144,128]{1,0:T(1,128)}', space=vmem, size = 0x12000, scoped, tag = 'internal scratch']
  %s0 = inlined_call_operand.vmem [shape: f32[2,8,16], index: 0, kind: input, shape index: {}]
  %s1 = inlined_call_operand.vmem [shape: f32[2,4,32,8], index: 1, kind: input, shape index: {}]
  %s2 = inlined_call_operand.hbm [shape: f32[2,4,16,16], index: 2, kind: output, shape index: {}]
  %s3 = sld [smem:[#allocation0]]
  $region41: #{tpu_custom_call.1} parent=0
    _
  %s5 = ssub.s32 1, %s3
  %s6 = scalar_select 0, %s5, %s3
  $region1: #{tpu_custom_call.1} parent=0
    #allocation2 [shape = 'u8[32768]{0}', space=vmem, size = 0x8000, scoped, tag = 'output window, operand 0']
    #allocation3 [shape = 's32[2]{0}', space=sflag, size = 0x8, scoped, tag = 'scoped memory for tpu_custom_call.1']
    %7 = vsyncpa [#allocation3], 0
    %s8 = scalar_lea.sflag [#allocation3], 1
    %9 = vsyncpa %s8, 0
    loop: start=0, step=1, limit=6
    $region2: #{tpu_custom_call.1} parent=1 // loop_pre_header
      _
    $region3: #{tpu_custom_call.1} parent=1 // loop_header
      %s11 = sphi 0, %s15
      %p12 = scmp.ge.s32.totalorder %s11, 6
      %s18 = sphi 0, %s30
      %s19 = sphi 0, %s26
      %s20 = sphi 0, %s18
      %s21 = sphi 0, %s19
      %s22 = sphi 0, %s20
      %s23 = sphi 0, %s21
      %s31 = sphi 0, %s31
      %s33 = sphi 0, %s31
      %s34 = sphi 0, %s33
      %s48 = sphi 0, %s34
      %s56 = sphi 0, %s58
      %s59 = sphi 0, %s56
      %s60 = sphi 0, %s59
      %s76 = sphi 0, %s60
      %s84 = sphi 0, %s86
      %s87 = sphi 0, %s84
      %s88 = sphi 0, %s87
      %s104 = sphi 0, %s88
    $region4: #{tpu_custom_call.1} parent=1 // loop_header_branch
      %14 = sbr.rel (%p12) target = $region8
    $region5: #{tpu_custom_call.1} parent=1 // loop_body
      %s16 = ssub.s32 %s11, 1
      %s17 = ssub.s32 %s11, 2
      %s24 = sadd.s32 1, %s19
      %p25 = scmp.ge.s32.totalorder %s24, 2
      %s26 = scalar_select %p25, 0, %s24
      %s27 = sadd.s32 1, %s18
      %s28 = scalar_select %p25, %s27, %s18
      %p29 = scmp.ge.s32.totalorder %s28, 2
      %s30 = scalar_select %p29, 0, %s28
      %s32 = sadd.s32 %s31, 1
      %p35 = scmp.eq.s32.totalorder %s11, 3
      %p36 = scmp.ne.s32.totalorder %s31, %s33
      %p37 = scmp.eq.s32.totalorder %s11, 0
      %p38 = por %p36, %p37
      %p39 = scmp.ne.s32.totalorder %s31, %s33
      %p40 = scmp.eq.s32.totalorder %s16, 3
      %p41 = por %p39, %p40
      %p42 = scmp.ne.s32.totalorder %s33, %s34
      %p43 = scmp.eq.s32.totalorder %s16, 0
      %p44 = por %p42, %p43
      %p45 = scmp.ne.s32.totalorder %s33, %s34
      %p46 = scmp.eq.s32.totalorder %s17, 3
      %p47 = por %p45, %p46
      %p49 = scmp.ne.s32.totalorder %s34, %s48
      %p50 = scmp.eq.s32.totalorder %s17, 0
      %p51 = por %p49, %p50
      %s52 = ssub.s32 %s18, %s30
      %s53 = ssub.s32 %s19, %s26
      %s54 = sor.u32 %s52, %s53
      %p55 = scmp.eq.s32.totalorder %s54, 0
      %s57 = sadd.s32 %s56, 1
      %s58 = scalar_select %p55, %s56, %s57
      %p61 = pneg %p55
      %p62 = scmp.eq.s32.totalorder %s11, 3
      %p63 = por %p61, %p62
      %p64 = scmp.ne.s32.totalorder %s56, %s59
      %p65 = scmp.eq.s32.totalorder %s11, 0
      %p66 = por %p64, %p65
      %p67 = scmp.ne.s32.totalorder %s56, %s59
      %p68 = scmp.eq.s32.totalorder %s16, 3
      %p69 = por %p67, %p68
      %p70 = scmp.ne.s32.totalorder %s59, %s60
      %p71 = scmp.eq.s32.totalorder %s16, 0
      %p72 = por %p70, %p71
      %p73 = scmp.ne.s32.totalorder %s59, %s60
      %p74 = scmp.eq.s32.totalorder %s17, 3
      %p75 = por %p73, %p74
      %p77 = scmp.ne.s32.totalorder %s60, %s76
      %p78 = scmp.eq.s32.totalorder %s17, 0
      %p79 = por %p77, %p78
      %s80 = ssub.s32 %s18, %s30
      %s81 = ssub.s32 %s19, %s26
      %s82 = sor.u32 %s80, %s81
      %p83 = scmp.eq.s32.totalorder %s82, 0
      %s85 = sadd.s32 %s84, 1
      %s86 = scalar_select %p83, %s84, %s85
      %p89 = pneg %p83
      %p90 = scmp.eq.s32.totalorder %s11, 3
      %p91 = por %p89, %p90
      %p92 = scmp.ne.s32.totalorder %s84, %s87
      %p93 = scmp.eq.s32.totalorder %s11, 0
      %p94 = por %p92, %p93
      %p95 = scmp.ne.s32.totalorder %s84, %s87
      %p96 = scmp.eq.s32.totalorder %s16, 3
      %p97 = por %p95, %p96
      %p98 = scmp.ne.s32.totalorder %s87, %s88
      %p99 = scmp.eq.s32.totalorder %s16, 0
      %p100 = por %p98, %p99
      %p101 = scmp.ne.s32.totalorder %s87, %s88
      %p102 = scmp.eq.s32.totalorder %s17, 3
      %p103 = por %p101, %p102
      %p105 = scmp.ne.s32.totalorder %s88, %s104
      %p106 = scmp.eq.s32.totalorder %s17, 0
      %p107 = por %p105, %p106
      %p108 = scmp.le.s32.totalorder 1, %s11
      %p109 = scmp.lt.s32.totalorder %s11, 5
      %p110 = pnand %p108, %p109
      %p111 = pneg %p110
      // Predicated region
      $region9: #{tpu_custom_call.1} parent=5 // pred_check
        _
      $region10: #{tpu_custom_call.1} parent=5 // pred_check_branch
        %113 = sbr.rel (%p110) target = $region12
      $region11: #{tpu_custom_call.1} parent=5 // pred_region
        %s114 = ssub.s32 %s11, 1
        // Predicated region
        $region13: #{tpu_custom_call.1} parent=11 // pred_check
          %p115 = pneg %p44
        $region14: #{tpu_custom_call.1} parent=11 // pred_check_branch
          %117 = sbr.rel (%p115) target = $region16
        $region15: #{tpu_custom_call.1} parent=11 // pred_region
          _
        $region16: #{tpu_custom_call.1} parent=11 // pred_fallthru
          _
      $region12: #{tpu_custom_call.1} parent=5 // pred_fallthru
        _
      %p118 = scmp.lt.s32.totalorder %s11, 4
      // Predicated region
      $region17: #{tpu_custom_call.1} parent=5 // pred_check
        %p119 = pneg %p118
      $region18: #{tpu_custom_call.1} parent=5 // pred_check_branch
        %121 = sbr.rel (%p119) target = $region20
      $region19: #{tpu_custom_call.1} parent=5 // pred_region
        // Predicated region
        $region21: #{tpu_custom_call.1} parent=19 // pred_check
          %p122 = pneg %p66
        $region22: #{tpu_custom_call.1} parent=19 // pred_check_branch
          %124 = sbr.rel (%p122) target = $region24
        $region23: #{tpu_custom_call.1} parent=19 // pred_region
          %s125 = smul.u32 2, %s19
          %p126 = scmp.lt.s32.totalorder %s18, 1
          %s127 = scalar_select %p126, %s18, 1
          %p128 = scmp.lt.s32.totalorder %s125, 3
          %s129 = scalar_select %p128, %s125, 3
          %s130 = smul.addr %s129, 4
          %s131 = smul.addr %s127, 16
          %s132 = sadd.s32 %s130, %s131
          %s133 = smul.addr %s132, 8
          %s134 = scalar_lea.vmem %s1, %s133
          %s135 = smul.u32 2, %s19
        $region24: #{tpu_custom_call.1} parent=19 // pred_fallthru
          _
      $region20: #{tpu_custom_call.1} parent=5 // pred_fallthru
        _
      %p136 = scmp.le.s32.totalorder 1, %s11
      %p137 = scmp.lt.s32.totalorder %s11, 5
      %p138 = pnand %p136, %p137
      %p139 = pneg %p138
      // Predicated region
      $region25: #{tpu_custom_call.1} parent=5 // pred_check
        _
      $region26: #{tpu_custom_call.1} parent=5 // pred_check_branch
        %141 = sbr.rel (%p138) target = $region28
      $region27: #{tpu_custom_call.1} parent=5 // pred_region
        %s142 = ssub.s32 %s11, 1
        %p143 = pneg %p44
        %p144 = pneg %p41
        %s145 = smul.u32 2, %s21
        %p146 = scmp.lt.s32.totalorder %s20, 1
        %s147 = scalar_select %p146, %s20, 1
        %p148 = scmp.lt.s32.totalorder %s145, 3
        %s149 = scalar_select %p148, %s145, 3
        %s150 = smul.addr %s149, 4
        %s151 = smul.addr %s147, 16
        %s152 = sadd.s32 %s150, %s151
        %s153 = smul.addr %s152, 8
        %s154 = scalar_lea.vmem %s1, %s153
        %p155 = pneg %p72
        %p156 = pneg %p69
        %p157 = pneg %p100
        %p158 = pneg %p97
        %s159 = sand.u32 %s87, 1
        %s160 = scalar_lea.sflag [#allocation3], %s159
        %s161 = sand.u32 %s87, 1
        %s162 = smul.addr %s161, 32
        %s163 = scalar_lea.vmem [#allocation2], %s162
        %s164 = smul.u32 2, %s21
        %p165 = scmp.lt.s32.totalorder %s20, 1
        %s166 = scalar_select %p165, %s20, 1
        %p167 = scmp.lt.s32.totalorder %s164, 3
        %s168 = scalar_select %p167, %s164, 3
        %s169 = smul.addr %s168, 4
        %s170 = smul.addr %s166, 16
        %s171 = sadd.s32 %s169, %s170
        %s172 = smul.addr %s171, 8
        %s173 = scalar_lea.vmem %s1, %s172
        %s174 = smul.u32 2, %s21
        %s175 = smul.u32 2, %s21
        %v176 = vld [vmem:[%s173] sm:$0xff]
        %v177 = vld [vmem:[%s173 + $0x20] sm:$0xff]
        %v178 = vld [vmem:[%s0] sm:$0xff]
        %v179 = vld [vmem:[%s173 + $0x8] sm:$0xff]
        %v180 = vld [vmem:[%s173 + $0x28] sm:$0xff]
        %s181 = scalar_lea.vmem %s0, 8
        %v182 = vld [vmem:[%s181] sm:$0xff]
        %vm183 = vcmask 64512
        %v185 = vsel %vm183, %v179, 0
        %v188 = vsel %vm183, %v180, 0
        %190 = vmatprep.subr.mxu0 0.0
        %191 = vmatpush1.msra.mxu0 %v182
        %192 = vmatprep.subr.mxu0 0.0
        %193 = vmatpush1.msra.mxu0 0.0
        %194 = vmatprep.subr.mxu0 0.0
        %195 = vmatpush1.msra.mxu0 0.0
        %196 = vmatprep.subr.mxu0 0.0
        %197 = vmatpush1.msra.mxu0 0.0
        %198 = vmatprep.subr.mxu0 0.0
        %199 = vmatpush1.msra.mxu0 0.0
        %200 = vmatprep.subr.mxu0 0.0
        %201 = vmatpush1.msra.mxu0 0.0
        %202 = vmatprep.subr.mxu0 0.0
        %203 = vmatpush1.msra.mxu0 0.0
        %204 = vmatprep.subr.mxu0 0.0
        %205 = vmatpush1.msra.mxu0 0.0
        %206 = vmatprep.subr.mxu0 0.0
        %207 = vmatpush1.msra.mxu0 0.0
        %208 = vmatprep.subr.mxu0 0.0
        %209 = vmatpush1.msra.mxu0 0.0
        %210 = vmatprep.subr.mxu0 0.0
        %211 = vmatpush1.msra.mxu0 0.0
        %212 = vmatprep.subr.mxu0 0.0
        %213 = vmatpush1.msra.mxu0 0.0
        %214 = vmatprep.subr.mxu0 0.0
        %215 = vmatpush1.msra.mxu0 0.0
        %216 = vmatprep.subr.mxu0 0.0
        %217 = vmatpush1.msra.mxu0 0.0
        %218 = vmatprep.subr.mxu0 0.0
        %219 = vmatpush1.msra.mxu0 0.0
        %220 = vmatprep.subr.mxu0 0.0
        %221 = vmatpush1.msra.mxu0 0.0
        %222 = vmatprep.subr.mxu0 0.0
        %223 = vmatpush1.msra.mxu0 0.0
        %224 = vmatprep.subr.mxu0 0.0
        %225 = vmatpush1.msra.mxu0 0.0
        %226 = vmatprep.subr.mxu0 0.0
        %227 = vmatpush1.msra.mxu0 0.0
        %228 = vmatprep.subr.mxu0 0.0
        %229 = vmatpush1.msra.mxu0 0.0
        %230 = vmatprep.subr.mxu0 0.0
        %231 = vmatpush1.msra.mxu0 0.0
        %232 = vmatprep.subr.mxu0 0.0
        %233 = vmatpush1.msra.mxu0 0.0
        %234 = vmatprep.subr.mxu0 0.0
        %235 = vmatpush1.msra.mxu0 0.0
        %236 = vmatprep.subr.mxu0 0.0
        %237 = vmatpush1.msra.mxu0 0.0
        %238 = vmatprep.subr.mxu0 0.0
        %239 = vmatpush1.msra.mxu0 0.0
        %240 = vmatprep.subr.mxu0 0.0
        %241 = vmatpush1.msra.mxu0 0.0
        %242 = vmatprep.subr.mxu0 0.0
        %243 = vmatpush1.msra.mxu0 0.0
        %244 = vmatprep.subr.mxu0 0.0
        %245 = vmatpush1.msra.mxu0 0.0
        %246 = vmatprep.subr.mxu0 0.0
        %247 = vmatpush1.msra.mxu0 0.0
        %248 = vmatprep.subr.mxu0 0.0
        %249 = vmatpush1.msra.mxu0 0.0
        %250 = vmatprep.subr.mxu0 0.0
        %251 = vmatpush1.msra.mxu0 0.0
        %252 = vmatprep.subr.mxu0 0.0
        %253 = vmatpush1.msra.mxu0 0.0
        %254 = vmatprep.mubr.f32.mxu0 0.0
        %255 = vmatmul.mubr.f32.gmra.mrb[0].mxu0 %v185
        %v256 = vpop.f32.mrb[0].mxu0
        %v257 = vadd.f32 0.0, %v256
        %v258 = vpop.f32.mrb[0].mxu0
        %259 = vmatprep.mubr.f32.mxu0 0.0
        %260 = vmatmul.mubr.f32.gmra.mrb[0].mxu0 %v188
        %v261 = vpop.f32.mrb[0].mxu0
        %v262 = vadd.f32 0.0, %v261
        %v263 = vpop.f32.mrb[0].mxu0
        %264 = vdwg.mxu0
        %v266 = vsel %vm183, %v176, 0
        %v269 = vsel %vm183, %v177, 0
        %271 = vmatprep.subr.mxu0 0.0
        %272 = vmatpush1.msra.mxu0 %v178
        %273 = vmatprep.subr.mxu0 0.0
        %274 = vmatpush1.msra.mxu0 0.0
        %275 = vmatprep.subr.mxu0 0.0
        %276 = vmatpush1.msra.mxu0 0.0
        %277 = vmatprep.subr.mxu0 0.0
        %278 = vmatpush1.msra.mxu0 0.0
        %279 = vmatprep.subr.mxu0 0.0
        %280 = vmatpush1.msra.mxu0 0.0
        %281 = vmatprep.subr.mxu0 0.0
        %282 = vmatpush1.msra.mxu0 0.0
        %283 = vmatprep.subr.mxu0 0.0
        %284 = vmatpush1.msra.mxu0 0.0
        %285 = vmatprep.subr.mxu0 0.0
        %286 = vmatpush1.msra.mxu0 0.0
        %287 = vmatprep.subr.mxu0 0.0
        %288 = vmatpush1.msra.mxu0 0.0
        %289 = vmatprep.subr.mxu0 0.0
        %290 = vmatpush1.msra.mxu0 0.0
        %291 = vmatprep.subr.mxu0 0.0
        %292 = vmatpush1.msra.mxu0 0.0
        %293 = vmatprep.subr.mxu0 0.0
        %294 = vmatpush1.msra.mxu0 0.0
        %295 = vmatprep.subr.mxu0 0.0
        %296 = vmatpush1.msra.mxu0 0.0
        %297 = vmatprep.subr.mxu0 0.0
        %298 = vmatpush1.msra.mxu0 0.0
        %299 = vmatprep.subr.mxu0 0.0
        %300 = vmatpush1.msra.mxu0 0.0
        %301 = vmatprep.subr.mxu0 0.0
        %302 = vmatpush1.msra.mxu0 0.0
        %303 = vmatprep.subr.mxu0 0.0
        %304 = vmatpush1.msra.mxu0 0.0
        %305 = vmatprep.subr.mxu0 0.0
        %306 = vmatpush1.msra.mxu0 0.0
        %307 = vmatprep.subr.mxu0 0.0
        %308 = vmatpush1.msra.mxu0 0.0
        %309 = vmatprep.subr.mxu0 0.0
        %310 = vmatpush1.msra.mxu0 0.0
        %311 = vmatprep.subr.mxu0 0.0
        %312 = vmatpush1.msra.mxu0 0.0
        %313 = vmatprep.subr.mxu0 0.0
        %314 = vmatpush1.msra.mxu0 0.0
        %315 = vmatprep.subr.mxu0 0.0
        %316 = vmatpush1.msra.mxu0 0.0
        %317 = vmatprep.subr.mxu0 0.0
        %318 = vmatpush1.msra.mxu0 0.0
        %319 = vmatprep.subr.mxu0 0.0
        %320 = vmatpush1.msra.mxu0 0.0
        %321 = vmatprep.subr.mxu0 0.0
        %322 = vmatpush1.msra.mxu0 0.0
        %323 = vmatprep.subr.mxu0 0.0
        %324 = vmatpush1.msra.mxu0 0.0
        %325 = vmatprep.subr.mxu0 0.0
        %326 = vmatpush1.msra.mxu0 0.0
        %327 = vmatprep.subr.mxu0 0.0
        %328 = vmatpush1.msra.mxu0 0.0
        %329 = vmatprep.subr.mxu0 0.0
        %330 = vmatpush1.msra.mxu0 0.0
        %331 = vmatprep.subr.mxu0 0.0
        %332 = vmatpush1.msra.mxu0 0.0
        %333 = vmatprep.subr.mxu0 0.0
        %334 = vmatpush1.msra.mxu0 0.0
        %335 = vmatprep.mubr.f32.mxu0 0.0
        %336 = vmatmul.mubr.f32.gmra.mrb[0].mxu0 %v266
        %v337 = vpop.f32.mrb[0].mxu0
        %v338 = vadd.f32 %v257, %v337
        %v339 = vpop.f32.mrb[0].mxu0
        %340 = vmatprep.mubr.f32.mxu0 0.0
        %341 = vmatmul.mubr.f32.gmra.mrb[0].mxu0 %v269
        %v342 = vpop.f32.mrb[0].mxu0
        %v343 = vadd.f32 %v262, %v342
        %v344 = vpop.f32.mrb[0].mxu0
        %345 = vdwg.mxu0
        %v346 = vld [vmem:[%s173 + $0x10] sm:$0xff]
        %v347 = vld [vmem:[%s173 + $0x30] sm:$0xff]
        %v348 = vld [vmem:[%s173 + $0x18] sm:$0xff]
        %v349 = vld [vmem:[%s173 + $0x38] sm:$0xff]
        %v351 = vsel %vm183, %v348, 0
        %v354 = vsel %vm183, %v349, 0
        %356 = vmatprep.subr.mxu0 0.0
        %357 = vmatpush1.msra.mxu0 %v182
        %358 = vmatprep.subr.mxu0 0.0
        %359 = vmatpush1.msra.mxu0 0.0
        %360 = vmatprep.subr.mxu0 0.0
        %361 = vmatpush1.msra.mxu0 0.0
        %362 = vmatprep.subr.mxu0 0.0
        %363 = vmatpush1.msra.mxu0 0.0
        %364 = vmatprep.subr.mxu0 0.0
        %365 = vmatpush1.msra.mxu0 0.0
        %366 = vmatprep.subr.mxu0 0.0
        %367 = vmatpush1.msra.mxu0 0.0
        %368 = vmatprep.subr.mxu0 0.0
        %369 = vmatpush1.msra.mxu0 0.0
        %370 = vmatprep.subr.mxu0 0.0
        %371 = vmatpush1.msra.mxu0 0.0
        %372 = vmatprep.subr.mxu0 0.0
        %373 = vmatpush1.msra.mxu0 0.0
        %374 = vmatprep.subr.mxu0 0.0
        %375 = vmatpush1.msra.mxu0 0.0
        %376 = vmatprep.subr.mxu0 0.0
        %377 = vmatpush1.msra.mxu0 0.0
        %378 = vmatprep.subr.mxu0 0.0
        %379 = vmatpush1.msra.mxu0 0.0
        %380 = vmatprep.subr.mxu0 0.0
        %381 = vmatpush1.msra.mxu0 0.0
        %382 = vmatprep.subr.mxu0 0.0
        %383 = vmatpush1.msra.mxu0 0.0
        %384 = vmatprep.subr.mxu0 0.0
        %385 = vmatpush1.msra.mxu0 0.0
        %386 = vmatprep.subr.mxu0 0.0
        %387 = vmatpush1.msra.mxu0 0.0
        %388 = vmatprep.subr.mxu0 0.0
        %389 = vmatpush1.msra.mxu0 0.0
        %390 = vmatprep.subr.mxu0 0.0
        %391 = vmatpush1.msra.mxu0 0.0
        %392 = vmatprep.subr.mxu0 0.0
        %393 = vmatpush1.msra.mxu0 0.0
        %394 = vmatprep.subr.mxu0 0.0
        %395 = vmatpush1.msra.mxu0 0.0
        %396 = vmatprep.subr.mxu0 0.0
        %397 = vmatpush1.msra.mxu0 0.0
        %398 = vmatprep.subr.mxu0 0.0
        %399 = vmatpush1.msra.mxu0 0.0
        %400 = vmatprep.subr.mxu0 0.0
        %401 = vmatpush1.msra.mxu0 0.0
        %402 = vmatprep.subr.mxu0 0.0
        %403 = vmatpush1.msra.mxu0 0.0
        %404 = vmatprep.subr.mxu0 0.0
        %405 = vmatpush1.msra.mxu0 0.0
        %406 = vmatprep.subr.mxu0 0.0
        %407 = vmatpush1.msra.mxu0 0.0
        %408 = vmatprep.subr.mxu0 0.0
        %409 = vmatpush1.msra.mxu0 0.0
        %410 = vmatprep.subr.mxu0 0.0
        %411 = vmatpush1.msra.mxu0 0.0
        %412 = vmatprep.subr.mxu0 0.0
        %413 = vmatpush1.msra.mxu0 0.0
        %414 = vmatprep.subr.mxu0 0.0
        %415 = vmatpush1.msra.mxu0 0.0
        %416 = vmatprep.subr.mxu0 0.0
        %417 = vmatpush1.msra.mxu0 0.0
        %418 = vmatprep.subr.mxu0 0.0
        %419 = vmatpush1.msra.mxu0 0.0
        %420 = vmatprep.mubr.f32.mxu0 0.0
        %421 = vmatmul.mubr.f32.gmra.mrb[0].mxu0 %v351
        %v422 = vpop.f32.mrb[0].mxu0
        %v423 = vadd.f32 0.0, %v422
        %v424 = vpop.f32.mrb[0].mxu0
        %425 = vmatprep.mubr.f32.mxu0 0.0
        %426 = vmatmul.mubr.f32.gmra.mrb[0].mxu0 %v354
        %v427 = vpop.f32.mrb[0].mxu0
        %v428 = vadd.f32 0.0, %v427
        %v429 = vpop.f32.mrb[0].mxu0
        %430 = vdwg.mxu0
        %v432 = vsel %vm183, %v346, 0
        %v435 = vsel %vm183, %v347, 0
        %437 = vmatprep.subr.mxu0 0.0
        %438 = vmatpush1.msra.mxu0 %v178
        %439 = vmatprep.subr.mxu0 0.0
        %440 = vmatpush1.msra.mxu0 0.0
        %441 = vmatprep.subr.mxu0 0.0
        %442 = vmatpush1.msra.mxu0 0.0
        %443 = vmatprep.subr.mxu0 0.0
        %444 = vmatpush1.msra.mxu0 0.0
        %445 = vmatprep.subr.mxu0 0.0
        %446 = vmatpush1.msra.mxu0 0.0
        %447 = vmatprep.subr.mxu0 0.0
        %448 = vmatpush1.msra.mxu0 0.0
        %449 = vmatprep.subr.mxu0 0.0
        %450 = vmatpush1.msra.mxu0 0.0
        %451 = vmatprep.subr.mxu0 0.0
        %452 = vmatpush1.msra.mxu0 0.0
        %453 = vmatprep.subr.mxu0 0.0
        %454 = vmatpush1.msra.mxu0 0.0
        %455 = vmatprep.subr.mxu0 0.0
        %456 = vmatpush1.msra.mxu0 0.0
        %457 = vmatprep.subr.mxu0 0.0
        %458 = vmatpush1.msra.mxu0 0.0
        %459 = vmatprep.subr.mxu0 0.0
        %460 = vmatpush1.msra.mxu0 0.0
        %461 = vmatprep.subr.mxu0 0.0
        %462 = vmatpush1.msra.mxu0 0.0
        %463 = vmatprep.subr.mxu0 0.0
        %464 = vmatpush1.msra.mxu0 0.0
        %465 = vmatprep.subr.mxu0 0.0
        %466 = vmatpush1.msra.mxu0 0.0
        %467 = vmatprep.subr.mxu0 0.0
        %468 = vmatpush1.msra.mxu0 0.0
        %469 = vmatprep.subr.mxu0 0.0
        %470 = vmatpush1.msra.mxu0 0.0
        %471 = vmatprep.subr.mxu0 0.0
        %472 = vmatpush1.msra.mxu0 0.0
        %473 = vmatprep.subr.mxu0 0.0
        %474 = vmatpush1.msra.mxu0 0.0
        %475 = vmatprep.subr.mxu0 0.0
        %476 = vmatpush1.msra.mxu0 0.0
        %477 = vmatprep.subr.mxu0 0.0
        %478 = vmatpush1.msra.mxu0 0.0
        %479 = vmatprep.subr.mxu0 0.0
        %480 = vmatpush1.msra.mxu0 0.0
        %481 = vmatprep.subr.mxu0 0.0
        %482 = vmatpush1.msra.mxu0 0.0
        %483 = vmatprep.subr.mxu0 0.0
        %484 = vmatpush1.msra.mxu0 0.0
        %485 = vmatprep.subr.mxu0 0.0
        %486 = vmatpush1.msra.mxu0 0.0
        %487 = vmatprep.subr.mxu0 0.0
        %488 = vmatpush1.msra.mxu0 0.0
        %489 = vmatprep.subr.mxu0 0.0
        %490 = vmatpush1.msra.mxu0 0.0
        %491 = vmatprep.subr.mxu0 0.0
        %492 = vmatpush1.msra.mxu0 0.0
        %493 = vmatprep.subr.mxu0 0.0
        %494 = vmatpush1.msra.mxu0 0.0
        %495 = vmatprep.subr.mxu0 0.0
        %496 = vmatpush1.msra.mxu0 0.0
        %497 = vmatprep.subr.mxu0 0.0
        %498 = vmatpush1.msra.mxu0 0.0
        %499 = vmatprep.subr.mxu0 0.0
        %500 = vmatpush1.msra.mxu0 0.0
        %501 = vmatprep.mubr.f32.mxu0 0.0
        %502 = vmatmul.mubr.f32.gmra.mrb[0].mxu0 %v432
        %v503 = vpop.f32.mrb[0].mxu0
        %v504 = vadd.f32 %v423, %v503
        %v505 = vpop.f32.mrb[0].mxu0
        %506 = vmatprep.mubr.f32.mxu0 0.0
        %507 = vmatmul.mubr.f32.gmra.mrb[0].mxu0 %v435
        %v508 = vpop.f32.mrb[0].mxu0
        %v509 = vadd.f32 %v428, %v508
        %v510 = vpop.f32.mrb[0].mxu0
        %511 = vdwg.mxu0
        %v514 = vcombine.high %v338, %v338
        %v516 = vunpack.c.l.s4 1966171168
        %v517 = vunpack.c.0.s8 %v516
        %v518 = vlaneseq
        %v519 = vshrl.u32 %v518, 7
        %v520 = vsub.s32 %v517, %v519
        %v521 = vrot.slane %v338, %v520
        %v523 = vunpack.c.l.s4 1966171168
        %v524 = vunpack.c.0.s8 %v523
        %v525 = vlaneseq
        %v526 = vshrl.u32 %v525, 7
        %v527 = vsub.s32 %v524, %v526
        %v528 = vrot.slane %v514, %v527
        %v529 = vcombine.high %v521, %v521
        %v530 = vcombine.high %v528, %v528
        %v532 = vunpack.c.l.s4 1966171168
        %v533 = vunpack.c.0.s8 %v532
        %v534 = vlaneseq
        %v535 = vshrl.u32 %v534, 7
        %v536 = vsub.s32 %v533, %v535
        %v537 = vrot.slane %v521, %v536
        %v539 = vunpack.c.l.s4 1966171168
        %v540 = vunpack.c.0.s8 %v539
        %v541 = vlaneseq
        %v542 = vshrl.u32 %v541, 7
        %v543 = vsub.s32 %v540, %v542
        %v544 = vrot.slane %v528, %v543
        %v546 = vunpack.c.l.s4 1966171168
        %v547 = vunpack.c.0.s8 %v546
        %v548 = vlaneseq
        %v549 = vshrl.u32 %v548, 7
        %v550 = vsub.s32 %v547, %v549
        %v551 = vrot.slane %v529, %v550
        %v553 = vunpack.c.l.s4 1966171168
        %v554 = vunpack.c.0.s8 %v553
        %v555 = vlaneseq
        %v556 = vshrl.u32 %v555, 7
        %v557 = vsub.s32 %v554, %v556
        %v558 = vrot.slane %v530, %v557
        %v559 = vcombine.high %v537, %v537
        %v560 = vcombine.high %v544, %v544
        %v561 = vcombine.high %v551, %v551
        %v562 = vcombine.high %v558, %v558
        %v563 = vcombine.high %v343, %v343
        %v565 = vunpack.c.l.s4 1966171168
        %v566 = vunpack.c.0.s8 %v565
        %v567 = vlaneseq
        %v568 = vshrl.u32 %v567, 7
        %v569 = vsub.s32 %v566, %v568
        %v570 = vrot.slane %v343, %v569
        %v572 = vunpack.c.l.s4 1966171168
        %v573 = vunpack.c.0.s8 %v572
        %v574 = vlaneseq
        %v575 = vshrl.u32 %v574, 7
        %v576 = vsub.s32 %v573, %v575
        %v577 = vrot.slane %v563, %v576
        %v578 = vcombine.high %v570, %v570
        %v579 = vcombine.high %v577, %v577
        %v581 = vunpack.c.l.s4 1966171168
        %v582 = vunpack.c.0.s8 %v581
        %v583 = vlaneseq
        %v584 = vshrl.u32 %v583, 7
        %v585 = vsub.s32 %v582, %v584
        %v586 = vrot.slane %v570, %v585
        %v588 = vunpack.c.l.s4 1966171168
        %v589 = vunpack.c.0.s8 %v588
        %v590 = vlaneseq
        %v591 = vshrl.u32 %v590, 7
        %v592 = vsub.s32 %v589, %v591
        %v593 = vrot.slane %v577, %v592
        %v595 = vunpack.c.l.s4 1966171168
        %v596 = vunpack.c.0.s8 %v595
        %v597 = vlaneseq
        %v598 = vshrl.u32 %v597, 7
        %v599 = vsub.s32 %v596, %v598
        %v600 = vrot.slane %v578, %v599
        %v602 = vunpack.c.l.s4 1966171168
        %v603 = vunpack.c.0.s8 %v602
        %v604 = vlaneseq
        %v605 = vshrl.u32 %v604, 7
        %v606 = vsub.s32 %v603, %v605
        %v607 = vrot.slane %v579, %v606
        %v608 = vcombine.high %v586, %v586
        %v609 = vcombine.high %v593, %v593
        %v610 = vcombine.high %v600, %v600
        %v611 = vcombine.high %v607, %v607
        %v630 = vcombine.high %v504, %v504
        %v632 = vunpack.c.l.s4 1966171168
        %v633 = vunpack.c.0.s8 %v632
        %v634 = vlaneseq
        %v635 = vshrl.u32 %v634, 7
        %v636 = vsub.s32 %v633, %v635
        %v637 = vrot.slane %v504, %v636
        %v639 = vunpack.c.l.s4 1966171168
        %v640 = vunpack.c.0.s8 %v639
        %v641 = vlaneseq
        %v642 = vshrl.u32 %v641, 7
        %v643 = vsub.s32 %v640, %v642
        %v644 = vrot.slane %v630, %v643
        %v645 = vcombine.high %v637, %v637
        %v646 = vcombine.high %v644, %v644
        %v648 = vunpack.c.l.s4 1966171168
        %v649 = vunpack.c.0.s8 %v648
        %v650 = vlaneseq
        %v651 = vshrl.u32 %v650, 7
        %v652 = vsub.s32 %v649, %v651
        %v653 = vrot.slane %v637, %v652
        %v655 = vunpack.c.l.s4 1966171168
        %v656 = vunpack.c.0.s8 %v655
        %v657 = vlaneseq
        %v658 = vshrl.u32 %v657, 7
        %v659 = vsub.s32 %v656, %v658
        %v660 = vrot.slane %v644, %v659
        %v662 = vunpack.c.l.s4 1966171168
        %v663 = vunpack.c.0.s8 %v662
        %v664 = vlaneseq
        %v665 = vshrl.u32 %v664, 7
        %v666 = vsub.s32 %v663, %v665
        %v667 = vrot.slane %v645, %v666
        %v669 = vunpack.c.l.s4 1966171168
        %v670 = vunpack.c.0.s8 %v669
        %v671 = vlaneseq
        %v672 = vshrl.u32 %v671, 7
        %v673 = vsub.s32 %v670, %v672
        %v674 = vrot.slane %v646, %v673
        %v675 = vcombine.high %v653, %v653
        %v676 = vcombine.high %v660, %v660
        %v677 = vcombine.high %v667, %v667
        %v678 = vcombine.high %v674, %v674
        %v679 = vcombine.high %v509, %v509
        %v681 = vunpack.c.l.s4 1966171168
        %v682 = vunpack.c.0.s8 %v681
        %v683 = vlaneseq
        %v684 = vshrl.u32 %v683, 7
        %v685 = vsub.s32 %v682, %v684
        %v686 = vrot.slane %v509, %v685
        %v688 = vunpack.c.l.s4 1966171168
        %v689 = vunpack.c.0.s8 %v688
        %v690 = vlaneseq
        %v691 = vshrl.u32 %v690, 7
        %v692 = vsub.s32 %v689, %v691
        %v693 = vrot.slane %v679, %v692
        %v694 = vcombine.high %v686, %v686
        %v695 = vcombine.high %v693, %v693
        %v697 = vunpack.c.l.s4 1966171168
        %v698 = vunpack.c.0.s8 %v697
        %v699 = vlaneseq
        %v700 = vshrl.u32 %v699, 7
        %v701 = vsub.s32 %v698, %v700
        %v702 = vrot.slane %v686, %v701
        %v704 = vunpack.c.l.s4 1966171168
        %v705 = vunpack.c.0.s8 %v704
        %v706 = vlaneseq
        %v707 = vshrl.u32 %v706, 7
        %v708 = vsub.s32 %v705, %v707
        %v709 = vrot.slane %v693, %v708
        %v711 = vunpack.c.l.s4 1966171168
        %v712 = vunpack.c.0.s8 %v711
        %v713 = vlaneseq
        %v714 = vshrl.u32 %v713, 7
        %v715 = vsub.s32 %v712, %v714
        %v716 = vrot.slane %v694, %v715
        %v718 = vunpack.c.l.s4 1966171168
        %v719 = vunpack.c.0.s8 %v718
        %v720 = vlaneseq
        %v721 = vshrl.u32 %v720, 7
        %v722 = vsub.s32 %v719, %v721
        %v723 = vrot.slane %v695, %v722
        %v724 = vcombine.high %v702, %v702
        %v725 = vcombine.high %v709, %v709
        %v726 = vcombine.high %v716, %v716
        %v727 = vcombine.high %v723, %v723
        %v728 = vlaneseq
        %v729 = vshrl.u32 %v728, 7
        %v730 = vsub.s32 0, %v729
        %v731 = vrot.slane %v653, %v730
        %v732 = vlaneseq
        %v733 = vshrl.u32 %v732, 7
        %v734 = vsub.s32 0, %v733
        %v735 = vrot.slane %v667, %v734
        %v736 = vlaneseq
        %v737 = vshrl.u32 %v736, 7
        %v738 = vsub.s32 0, %v737
        %v739 = vrot.slane %v675, %v738
        %v740 = vlaneseq
        %v741 = vshrl.u32 %v740, 7
        %v742 = vsub.s32 0, %v741
        %v743 = vrot.slane %v677, %v742
        %v744 = vlaneseq
        %v745 = vshrl.u32 %v744, 7
        %v746 = vsub.s32 0, %v745
        %v747 = vrot.slane %v660, %v746
        %v748 = vlaneseq
        %v749 = vshrl.u32 %v748, 7
        %v750 = vsub.s32 0, %v749
        %v751 = vrot.slane %v674, %v750
        %v752 = vlaneseq
        %v753 = vshrl.u32 %v752, 7
        %v754 = vsub.s32 0, %v753
        %v755 = vrot.slane %v676, %v754
        %v756 = vlaneseq
        %v757 = vshrl.u32 %v756, 7
        %v758 = vsub.s32 0, %v757
        %v759 = vrot.slane %v678, %v758
        %v760 = vlaneseq
        %v761 = vshrl.u32 %v760, 7
        %v762 = vsub.s32 0, %v761
        %v763 = vrot.slane %v702, %v762
        %v764 = vlaneseq
        %v765 = vshrl.u32 %v764, 7
        %v766 = vsub.s32 0, %v765
        %v767 = vrot.slane %v716, %v766
        %v768 = vlaneseq
        %v769 = vshrl.u32 %v768, 7
        %v770 = vsub.s32 0, %v769
        %v771 = vrot.slane %v724, %v770
        %v772 = vlaneseq
        %v773 = vshrl.u32 %v772, 7
        %v774 = vsub.s32 0, %v773
        %v775 = vrot.slane %v726, %v774
        %v776 = vlaneseq
        %v777 = vshrl.u32 %v776, 7
        %v778 = vsub.s32 0, %v777
        %v779 = vrot.slane %v709, %v778
        %v780 = vlaneseq
        %v781 = vshrl.u32 %v780, 7
        %v782 = vsub.s32 0, %v781
        %v783 = vrot.slane %v723, %v782
        %v784 = vlaneseq
        %v785 = vshrl.u32 %v784, 7
        %v786 = vsub.s32 0, %v785
        %v787 = vrot.slane %v725, %v786
        %v788 = vlaneseq
        %v789 = vshrl.u32 %v788, 7
        %v790 = vsub.s32 0, %v789
        %v791 = vrot.slane %v727, %v790
        %vm808 = vcmask 1040384
        %v809 = vsel %vm808, %v537, %v731
        %v810 = vsel %vm808, %v551, %v735
        %v811 = vsel %vm808, %v559, %v739
        %v812 = vsel %vm808, %v561, %v743
        %v813 = vsel %vm808, %v544, %v747
        %v814 = vsel %vm808, %v558, %v751
        %v815 = vsel %vm808, %v560, %v755
        %v816 = vsel %vm808, %v562, %v759
        %v817 = vsel %vm808, %v586, %v763
        %v818 = vsel %vm808, %v600, %v767
        %v819 = vsel %vm808, %v608, %v771
        %v820 = vsel %vm808, %v610, %v775
        %v821 = vsel %vm808, %v593, %v779
        %v822 = vsel %vm808, %v607, %v783
        %v823 = vsel %vm808, %v609, %v787
        %v824 = vsel %vm808, %v611, %v791
        %v841 = vcombine.low %v809, %v810
        %v842 = vcombine.low %v811, %v812
        %v844 = vunpack.c.l.s4 1983009808
        %v845 = vunpack.c.0.s8 %v844
        %v846 = vlaneseq
        %v847 = vshrl.u32 %v846, 7
        %v848 = vsub.s32 %v845, %v847
        %v849 = vrot.slane %v841, %v848
        %v851 = vunpack.c.l.s4 1983009808
        %v852 = vunpack.c.0.s8 %v851
        %v853 = vlaneseq
        %v854 = vshrl.u32 %v853, 7
        %v855 = vsub.s32 %v852, %v854
        %v856 = vrot.slane %v842, %v855
        %v857 = vcombine.low %v849, %v856
        %v858 = vcombine.low %v813, %v814
        %v859 = vcombine.low %v815, %v816
        %v861 = vunpack.c.l.s4 1983009808
        %v862 = vunpack.c.0.s8 %v861
        %v863 = vlaneseq
        %v864 = vshrl.u32 %v863, 7
        %v865 = vsub.s32 %v862, %v864
        %v866 = vrot.slane %v858, %v865
        %v868 = vunpack.c.l.s4 1983009808
        %v869 = vunpack.c.0.s8 %v868
        %v870 = vlaneseq
        %v871 = vshrl.u32 %v870, 7
        %v872 = vsub.s32 %v869, %v871
        %v873 = vrot.slane %v859, %v872
        %v874 = vcombine.low %v866, %v873
        %v875 = vcombine.low %v817, %v818
        %v876 = vcombine.low %v819, %v820
        %v878 = vunpack.c.l.s4 1983009808
        %v879 = vunpack.c.0.s8 %v878
        %v880 = vlaneseq
        %v881 = vshrl.u32 %v880, 7
        %v882 = vsub.s32 %v879, %v881
        %v883 = vrot.slane %v875, %v882
        %v885 = vunpack.c.l.s4 1983009808
        %v886 = vunpack.c.0.s8 %v885
        %v887 = vlaneseq
        %v888 = vshrl.u32 %v887, 7
        %v889 = vsub.s32 %v886, %v888
        %v890 = vrot.slane %v876, %v889
        %v891 = vcombine.low %v883, %v890
        %v892 = vcombine.low %v821, %v822
        %v893 = vcombine.low %v823, %v824
        %v895 = vunpack.c.l.s4 1983009808
        %v896 = vunpack.c.0.s8 %v895
        %v897 = vlaneseq
        %v898 = vshrl.u32 %v897, 7
        %v899 = vsub.s32 %v896, %v898
        %v900 = vrot.slane %v892, %v899
        %v902 = vunpack.c.l.s4 1983009808
        %v903 = vunpack.c.0.s8 %v902
        %v904 = vlaneseq
        %v905 = vshrl.u32 %v904, 7
        %v906 = vsub.s32 %v903, %v905
        %v907 = vrot.slane %v893, %v906
        %v908 = vcombine.low %v900, %v907
        %vm913 = vcmask 130048
        %914 = vst.msk [vmem:[%s163] sm:$0xff] %vm913, %v857
        %915 = vst.msk [vmem:[%s163 + $0x8] sm:$0xff] %vm913, %v874
        %916 = vst.msk [vmem:[%s163 + $0x10] sm:$0xff] %vm913, %v891
        %917 = vst.msk [vmem:[%s163 + $0x18] sm:$0xff] %vm913, %v908
        %s918 = sand.u32 %s87, 1
        %s919 = scalar_lea.sflag [#allocation3], %s918
        %s920 = sand.u32 %s87, 1
        %s921 = smul.addr %s920, 32
        %s922 = scalar_lea.vmem [#allocation2], %s921
        // Predicated region
        $region29: #{tpu_custom_call.1} parent=27 // pred_check
          %p923 = pneg %p97
        $region30: #{tpu_custom_call.1} parent=27 // pred_check_branch
          %925 = sbr.rel (%p923) target = $region32
        $region31: #{tpu_custom_call.1} parent=27 // pred_region
          %s926 = smul.u32 2, %s21
          %s928 = ssub.s32 512, 512
          %929 = vsyncadd %s919, %s928
          %s930 = smul.addr %s926, 2
          %s931 = smul.addr %s20, 8
          %s932 = sadd.s32 %s930, %s931
          %s933 = smul.addr %s932, 128
          %s934 = scalar_lea.hbm %s2, %s933
          %s935 = sshll.u32 %s922, 4
          %s936 = int_to_ptr.vmem [resolvable:$true] %s935
          %941 = dma.vmem_to_hbm [thread:$0]  %s936, 512, %s934, %s919, 128, 128, 8
        $region32: #{tpu_custom_call.1} parent=27 // pred_fallthru
          _
      $region28: #{tpu_custom_call.1} parent=5 // pred_fallthru
        _
      %p942 = scmp.le.s32.totalorder 2, %s11
      // Predicated region
      $region33: #{tpu_custom_call.1} parent=5 // pred_check
        %p943 = pneg %p942
      $region34: #{tpu_custom_call.1} parent=5 // pred_check_branch
        %945 = sbr.rel (%p943) target = $region36
      $region35: #{tpu_custom_call.1} parent=5 // pred_region
        %s946 = ssub.s32 %s11, 2
        // Predicated region
        $region37: #{tpu_custom_call.1} parent=35 // pred_check
          %p947 = pneg %p103
        $region38: #{tpu_custom_call.1} parent=35 // pred_check_branch
          %949 = sbr.rel (%p947) target = $region40
        $region39: #{tpu_custom_call.1} parent=35 // pred_region
          %s950 = sand.u32 %s88, 1
          %s951 = scalar_lea.sflag [#allocation3], %s950
          %s952 = sand.u32 %s88, 1
          %s953 = smul.addr %s952, 32
          %s954 = scalar_lea.vmem [#allocation2], %s953
          %955 = dma.done %s951, 512
        $region40: #{tpu_custom_call.1} parent=35 // pred_fallthru
          _
      $region36: #{tpu_custom_call.1} parent=5 // pred_fallthru
        _
    $region6: #{tpu_custom_call.1} parent=1 // loop_footer
      %s15 = sadd.s32 1, %s11
    $region7: #{tpu_custom_call.1} parent=1 // loop_footer_branch
      %10 = sbr.rel target = $region3
    $region8: #{tpu_custom_call.1} parent=1 // loop_exit
      _
    %956 = vsyncpa [#allocation3], 1
    %s957 = scalar_lea.sflag [#allocation3], 1
    %958 = vsyncpa %s957, 1

</llo_original>
